<compile_context>
chip_gen: v6e
topology: v6e:2x2x1
jax: 0.10.0
libtpu: 0.0.40
codegen_flags: <defaults>
</compile_context>

<pallas_src>
import math

import jax
import jax.numpy as jnp
from jax.experimental import pallas as pl
from jax.experimental.pallas import tpu as pltpu


# ----------------------------- in-kernel helpers -----------------------------

def _gelu(x):
    # exact GELU (PyTorch nn.GELU() default, erf based)
    return 0.5 * x * (1.0 + jax.lax.erf(x * (1.0 / math.sqrt(2.0))))


# --------------------------------- kernel ------------------------------------

def dot_attention_kernel(q_ref, k_ref, v_ref, o_ref):
    q = q_ref[0]                                               # (L, D)
    k = k_ref[0]                                               # (L, D)
    v = v_ref[0]                                               # (L, D)

    # softmax over the sequence axis (torch dim=1 -> axis 0 of the (L, D) tile)
    q = jax.nn.softmax(q, axis=0)

    # scores = sum_L GELU(q * k); keepdims -> (1, D); torch .repeat(1, L, 1)
    # is numerically a broadcast, so just multiply.
    scores = jnp.sum(_gelu(q * k), axis=0, keepdims=True)      # (1, D)

    o_ref[0] = v * scores                                      # dropout = identity


# ------------------------------ pallas wrapper --------------------------------

@jax.jit
def dot_attention(queries, keys, values):
    """queries/keys/values: (B, L, H, E) float32.  Returns ((B, L, H*E), None)."""
    B, L, H, E = queries.shape
    D = H * E
    q = queries.reshape(B, L, D)
    k = keys.reshape(B, L, D)
    v = values.reshape(B, L, D)

    spec = pl.BlockSpec((1, L, D), lambda b: (b, 0, 0))

    out = pl.pallas_call(
        dot_attention_kernel,
        out_shape=jax.ShapeDtypeStruct((B, L, D), values.dtype),
        grid_spec=pltpu.PrefetchScalarGridSpec(
            num_scalar_prefetch=0,
            grid=(B,),
            in_specs=[spec, spec, spec],
            out_specs=spec,
        ),
        compiler_params=pltpu.CompilerParams(
            dimension_semantics=("parallel",)),
    )(q, k, v)
    return out, None                                           # attn weights are None


# ------------------------------ pure-JAX reference -----------------------------

def reference_forward(queries, keys, values):
    B, L, H, E = queries.shape
    q = queries.reshape(B, L, -1)
    k = keys.reshape(B, L, -1)
    v = values.reshape(B, L, -1)
    q = jax.nn.softmax(q, axis=1)
    scores = jnp.sum(_gelu(q * k), axis=1, keepdims=True)      # (B, 1, D)
    return v * scores


# ----------------------------------- main -------------------------------------

if __name__ == "__main__":
    # Small shapes consistent with the module; D = H*E = 128 keeps the last dim
    # lane-dense (full 128-lane unmasked stores).
    B, L, H, E = 2, 16, 4, 32

    key = jax.random.PRNGKey(0)
    kq, kk, kv = jax.random.split(key, 3)
    queries = jax.random.normal(kq, (B, L, H, E), jnp.float32)
    keys = jax.random.normal(kk, (B, L, H, E), jnp.float32)
    values = jax.random.normal(kv, (B, L, H, E), jnp.float32)

    out, attn = dot_attention(queries, keys, values)
    jax.block_until_ready(out)

    assert out.shape == (B, L, H * E)
    assert attn is None
    assert bool(jnp.all(jnp.isfinite(out)))

    ref = reference_forward(queries, keys, values)
    assert bool(jnp.allclose(out, ref, atol=1e-5, rtol=1e-5))

    print("KERNEL_OK")
</pallas_src>

<mosaic_0001>
module attributes {stable_mosaic.version = 11 : i64} {
  func.func @dot_attention_kernel(%arg0: i32, %arg1: memref<1x16x128xf32, #tpu.memory_space<vmem>>, %arg2: memref<1x16x128xf32, #tpu.memory_space<vmem>>, %arg3: memref<1x16x128xf32, #tpu.memory_space<vmem>>, %arg4: memref<1x16x128xf32, #tpu.memory_space<vmem>>) attributes {dimension_semantics = [#tpu.dimension_semantics<parallel>], iteration_bounds = array<i64: 2>, scalar_prefetch = 0 : i64, scratch_operands = 0 : i64, tpu.core_type = #tpu.core_type<tc>, window_params = [{transform_indices = @transform_0, window_bounds = array<i64: 1, 16, 128>}, {transform_indices = @transform_1, window_bounds = array<i64: 1, 16, 128>}, {transform_indices = @transform_2, window_bounds = array<i64: 1, 16, 128>}, {transform_indices = @transform_3, window_bounds = array<i64: 1, 16, 128>}]} {
    %c0 = arith.constant 0 : index
    %c0_0 = arith.constant 0 : index
    %c0_1 = arith.constant 0 : index
    %0 = vector.load %arg1[%c0, %c0_0, %c0_1] : memref<1x16x128xf32, #tpu.memory_space<vmem>>, vector<1x16x128xf32>
    %1 = vector.shape_cast %0 : vector<1x16x128xf32> to vector<16x128xf32>
    %c0_2 = arith.constant 0 : index
    %c0_3 = arith.constant 0 : index
    %c0_4 = arith.constant 0 : index
    %2 = vector.load %arg2[%c0_2, %c0_3, %c0_4] : memref<1x16x128xf32, #tpu.memory_space<vmem>>, vector<1x16x128xf32>
    %3 = vector.shape_cast %2 : vector<1x16x128xf32> to vector<16x128xf32>
    %c0_5 = arith.constant 0 : index
    %c0_6 = arith.constant 0 : index
    %c0_7 = arith.constant 0 : index
    %4 = vector.load %arg3[%c0_5, %c0_6, %c0_7] : memref<1x16x128xf32, #tpu.memory_space<vmem>>, vector<1x16x128xf32>
    %5 = vector.shape_cast %4 : vector<1x16x128xf32> to vector<16x128xf32>
    %cst = arith.constant dense<0xFF800000> : vector<128xf32>
    %6 = vector.multi_reduction <maximumf>, %1, %cst [0] : vector<16x128xf32> to vector<128xf32>
    %cst_8 = arith.constant 0xFF800000 : f32
    %7 = vector.broadcast %cst_8 : f32 to vector<128xf32>
    %8 = arith.maximumf %7, %6 : vector<128xf32>
    %9 = vector.shape_cast %8 : vector<128xf32> to vector<1x128xf32>
    %10 = vector.broadcast %9 : vector<1x128xf32> to vector<16x128xf32>
    %11 = arith.subf %1, %10 : vector<16x128xf32>
    %12 = math.exp %11 : vector<16x128xf32>
    %cst_9 = arith.constant dense<0.000000e+00> : vector<128xf32>
    %13 = vector.multi_reduction <add>, %12, %cst_9 [0] : vector<16x128xf32> to vector<128xf32>
    %14 = vector.shape_cast %13 : vector<128xf32> to vector<1x128xf32>
    %15 = vector.broadcast %14 : vector<1x128xf32> to vector<16x128xf32>
    %16 = arith.divf %12, %15 : vector<16x128xf32>
    %17 = arith.mulf %16, %3 : vector<16x128xf32>
    %cst_10 = arith.constant 5.000000e-01 : f32
    %18 = vector.broadcast %cst_10 : f32 to vector<16x128xf32>
    %19 = arith.mulf %18, %17 : vector<16x128xf32>
    %cst_11 = arith.constant 0.707106769 : f32
    %20 = vector.broadcast %cst_11 : f32 to vector<16x128xf32>
    %21 = arith.mulf %17, %20 : vector<16x128xf32>
    %22 = math.erf %21 : vector<16x128xf32>
    %cst_12 = arith.constant 1.000000e+00 : f32
    %23 = vector.broadcast %cst_12 : f32 to vector<16x128xf32>
    %24 = arith.addf %23, %22 : vector<16x128xf32>
    %25 = arith.mulf %19, %24 : vector<16x128xf32>
    %cst_13 = arith.constant dense<0.000000e+00> : vector<128xf32>
    %26 = vector.multi_reduction <add>, %25, %cst_13 [0] : vector<16x128xf32> to vector<128xf32>
    %27 = vector.shape_cast %26 : vector<128xf32> to vector<1x128xf32>
    %28 = vector.broadcast %27 : vector<1x128xf32> to vector<16x128xf32>
    %29 = arith.mulf %5, %28 : vector<16x128xf32>
    %c0_14 = arith.constant 0 : index
    %c0_15 = arith.constant 0 : index
    %c0_16 = arith.constant 0 : index
    %30 = vector.load %arg4[%c0_14, %c0_15, %c0_16] : memref<1x16x128xf32, #tpu.memory_space<vmem>>, vector<1x16x128xf32>
    %31 = vector.shape_cast %30 : vector<1x16x128xf32> to vector<16x128xf32>
    %32 = vector.shape_cast %29 : vector<16x128xf32> to vector<1x16x128xf32>
    tpu.vector_store %arg4[%c0_14, %c0_15, %c0_16], %32 {strides = array<i32>} : memref<1x16x128xf32, #tpu.memory_space<vmem>>, vector<1x16x128xf32>,
    return
  }
  func.func @transform_0(%arg0: i32) -> (i32, i32, i32) {
    %c0_i32 = arith.constant 0 : i32
    %c0_i32_0 = arith.constant 0 : i32
    %c0_i32_1 = arith.constant 0 : i32
    return %arg0, %c0_i32, %c0_i32_0 : i32, i32, i32
  }
  func.func @transform_1(%arg0: i32) -> (i32, i32, i32) {
    %c0_i32 = arith.constant 0 : i32
    %c0_i32_0 = arith.constant 0 : i32
    %c0_i32_1 = arith.constant 0 : i32
    return %arg0, %c0_i32, %c0_i32_0 : i32, i32, i32
  }
  func.func @transform_2(%arg0: i32) -> (i32, i32, i32) {
    %c0_i32 = arith.constant 0 : i32
    %c0_i32_0 = arith.constant 0 : i32
    %c0_i32_1 = arith.constant 0 : i32
    return %arg0, %c0_i32, %c0_i32_0 : i32, i32, i32
  }
  func.func @transform_3(%arg0: i32) -> (i32, i32, i32) {
    %c0_i32 = arith.constant 0 : i32
    %c0_i32_0 = arith.constant 0 : i32
    %c0_i32_1 = arith.constant 0 : i32
    return %arg0, %c0_i32, %c0_i32_0 : i32, i32, i32
  }
}

</mosaic_0001>

<llo_original>
// kernel: dot_attention.1
$region0: #{dot_attention.1}
  #allocation0 [shape = 'u32[]', space=smem, size = 0x4, offset = 0x4, fixed_abs, tag = 'smem constant byte address 0x4 - core index']
  #allocation1 [shape = 'u32[144,128]{1,0:T(1,128)}', space=vmem, size = 0x12000, scoped, tag = 'internal scratch']
  %s0 = inlined_call_operand.vmem [shape: f32[2,16,128], index: 0, kind: input, shape index: {}]
  %s1 = inlined_call_operand.vmem [shape: f32[2,16,128], index: 1, kind: input, shape index: {}]
  %s2 = inlined_call_operand.vmem [shape: f32[2,16,128], index: 2, kind: input, shape index: {}]
  %s3 = inlined_call_operand.hbm [shape: f32[2,16,128], index: 3, kind: output, shape index: {}]
  %s4 = sld [smem:[#allocation0]]
  $region45: #{dot_attention.1} parent=0
    _
  %s6 = ssub.s32 1, %s4
  %s7 = scalar_select 0, %s6, %s4
  $region1: #{dot_attention.1} parent=0
    #allocation2 [shape = 'u8[16384]{0}', space=vmem, size = 0x4000, scoped, tag = 'output window, operand 0']
    #allocation3 [shape = 's32[2]{0}', space=sflag, size = 0x8, scoped, tag = 'scoped memory for dot_attention.1']
    %8 = vsyncpa [#allocation3], 0
    %s9 = scalar_lea.sflag [#allocation3], 1
    %10 = vsyncpa %s9, 0
    loop: start=0, step=1, limit=4
    $region2: #{dot_attention.1} parent=1 // loop_pre_header
      _
    $region3: #{dot_attention.1} parent=1 // loop_header
      %s12 = sphi 0, %s16
      %p13 = scmp.ge.s32.totalorder %s12, 4
      %s22 = sphi 0, %s24
      %s25 = sphi 0, %s22
      %s26 = sphi 0, %s25
      %s42 = sphi 0, %s26
      %s48 = sphi 0, %s50
      %s51 = sphi 0, %s48
      %s52 = sphi 0, %s51
      %s68 = sphi 0, %s52
      %s74 = sphi 0, %s76
      %s77 = sphi 0, %s74
      %s78 = sphi 0, %s77
      %s94 = sphi 0, %s78
      %s100 = sphi 0, %s102
      %s103 = sphi 0, %s100
      %s104 = sphi 0, %s103
      %s120 = sphi 0, %s104
    $region4: #{dot_attention.1} parent=1 // loop_header_branch
      %15 = sbr.rel (%p13) target = $region8
    $region5: #{dot_attention.1} parent=1 // loop_body
      %s17 = ssub.s32 %s12, 1
      %s18 = ssub.s32 %s12, 2
      %s19 = sadd.s32 %s12, 1
      %s20 = ssub.s32 %s12, %s19
      %p21 = scmp.eq.s32.totalorder %s20, 0
      %s23 = sadd.s32 %s22, 1
      %s24 = scalar_select %p21, %s22, %s23
      %p27 = pneg %p21
      %p28 = scmp.eq.s32.totalorder %s12, 1
      %p29 = por %p27, %p28
      %p30 = scmp.ne.s32.totalorder %s22, %s25
      %p31 = scmp.eq.s32.totalorder %s12, 0
      %p32 = por %p30, %p31
      %p33 = scmp.ne.s32.totalorder %s22, %s25
      %p34 = scmp.eq.s32.totalorder %s17, 1
      %p35 = por %p33, %p34
      %p36 = scmp.ne.s32.totalorder %s25, %s26
      %p37 = scmp.eq.s32.totalorder %s17, 0
      %p38 = por %p36, %p37
      %p39 = scmp.ne.s32.totalorder %s25, %s26
      %p40 = scmp.eq.s32.totalorder %s18, 1
      %p41 = por %p39, %p40
      %p43 = scmp.ne.s32.totalorder %s26, %s42
      %p44 = scmp.eq.s32.totalorder %s18, 0
      %p45 = por %p43, %p44
      %s46 = ssub.s32 %s12, %s19
      %p47 = scmp.eq.s32.totalorder %s46, 0
      %s49 = sadd.s32 %s48, 1
      %s50 = scalar_select %p47, %s48, %s49
      %p53 = pneg %p47
      %p54 = scmp.eq.s32.totalorder %s12, 1
      %p55 = por %p53, %p54
      %p56 = scmp.ne.s32.totalorder %s48, %s51
      %p57 = scmp.eq.s32.totalorder %s12, 0
      %p58 = por %p56, %p57
      %p59 = scmp.ne.s32.totalorder %s48, %s51
      %p60 = scmp.eq.s32.totalorder %s17, 1
      %p61 = por %p59, %p60
      %p62 = scmp.ne.s32.totalorder %s51, %s52
      %p63 = scmp.eq.s32.totalorder %s17, 0
      %p64 = por %p62, %p63
      %p65 = scmp.ne.s32.totalorder %s51, %s52
      %p66 = scmp.eq.s32.totalorder %s18, 1
      %p67 = por %p65, %p66
      %p69 = scmp.ne.s32.totalorder %s52, %s68
      %p70 = scmp.eq.s32.totalorder %s18, 0
      %p71 = por %p69, %p70
      %s72 = ssub.s32 %s12, %s19
      %p73 = scmp.eq.s32.totalorder %s72, 0
      %s75 = sadd.s32 %s74, 1
      %s76 = scalar_select %p73, %s74, %s75
      %p79 = pneg %p73
      %p80 = scmp.eq.s32.totalorder %s12, 1
      %p81 = por %p79, %p80
      %p82 = scmp.ne.s32.totalorder %s74, %s77
      %p83 = scmp.eq.s32.totalorder %s12, 0
      %p84 = por %p82, %p83
      %p85 = scmp.ne.s32.totalorder %s74, %s77
      %p86 = scmp.eq.s32.totalorder %s17, 1
      %p87 = por %p85, %p86
      %p88 = scmp.ne.s32.totalorder %s77, %s78
      %p89 = scmp.eq.s32.totalorder %s17, 0
      %p90 = por %p88, %p89
      %p91 = scmp.ne.s32.totalorder %s77, %s78
      %p92 = scmp.eq.s32.totalorder %s18, 1
      %p93 = por %p91, %p92
      %p95 = scmp.ne.s32.totalorder %s78, %s94
      %p96 = scmp.eq.s32.totalorder %s18, 0
      %p97 = por %p95, %p96
      %s98 = ssub.s32 %s12, %s19
      %p99 = scmp.eq.s32.totalorder %s98, 0
      %s101 = sadd.s32 %s100, 1
      %s102 = scalar_select %p99, %s100, %s101
      %p105 = pneg %p99
      %p106 = scmp.eq.s32.totalorder %s12, 1
      %p107 = por %p105, %p106
      %p108 = scmp.ne.s32.totalorder %s100, %s103
      %p109 = scmp.eq.s32.totalorder %s12, 0
      %p110 = por %p108, %p109
      %p111 = scmp.ne.s32.totalorder %s100, %s103
      %p112 = scmp.eq.s32.totalorder %s17, 1
      %p113 = por %p111, %p112
      %p114 = scmp.ne.s32.totalorder %s103, %s104
      %p115 = scmp.eq.s32.totalorder %s17, 0
      %p116 = por %p114, %p115
      %p117 = scmp.ne.s32.totalorder %s103, %s104
      %p118 = scmp.eq.s32.totalorder %s18, 1
      %p119 = por %p117, %p118
      %p121 = scmp.ne.s32.totalorder %s104, %s120
      %p122 = scmp.eq.s32.totalorder %s18, 0
      %p123 = por %p121, %p122
      %p124 = scmp.le.s32.totalorder 1, %s12
      %p125 = scmp.lt.s32.totalorder %s12, 3
      %p126 = pnand %p124, %p125
      %p127 = pneg %p126
      // Predicated region
      $region9: #{dot_attention.1} parent=5 // pred_check
        _
      $region10: #{dot_attention.1} parent=5 // pred_check_branch
        %129 = sbr.rel (%p126) target = $region12
      $region11: #{dot_attention.1} parent=5 // pred_region
        %s130 = ssub.s32 %s12, 1
      $region12: #{dot_attention.1} parent=5 // pred_fallthru
        _
      %p131 = scmp.lt.s32.totalorder %s12, 2
      // Predicated region
      $region13: #{dot_attention.1} parent=5 // pred_check
        %p132 = pneg %p131
      $region14: #{dot_attention.1} parent=5 // pred_check_branch
        %134 = sbr.rel (%p132) target = $region16
      $region15: #{dot_attention.1} parent=5 // pred_region
        // Predicated region
        $region17: #{dot_attention.1} parent=15 // pred_check
          %p135 = pneg %p32
        $region18: #{dot_attention.1} parent=15 // pred_check_branch
          %137 = sbr.rel (%p135) target = $region20
        $region19: #{dot_attention.1} parent=15 // pred_region
          %p138 = scmp.lt.s32.totalorder %s12, 1
          %s139 = scalar_select %p138, %s12, 1
          %s140 = smul.addr %s139, 2
          %s141 = smul.addr %s140, 8
          %s142 = scalar_lea.vmem %s0, %s141
        $region20: #{dot_attention.1} parent=15 // pred_fallthru
          _
        // Predicated region
        $region21: #{dot_attention.1} parent=15 // pred_check
          %p143 = pneg %p58
        $region22: #{dot_attention.1} parent=15 // pred_check_branch
          %145 = sbr.rel (%p143) target = $region24
        $region23: #{dot_attention.1} parent=15 // pred_region
          %p146 = scmp.lt.s32.totalorder %s12, 1
          %s147 = scalar_select %p146, %s12, 1
          %s148 = smul.addr %s147, 2
          %s149 = smul.addr %s148, 8
          %s150 = scalar_lea.vmem %s1, %s149
        $region24: #{dot_attention.1} parent=15 // pred_fallthru
          _
        // Predicated region
        $region25: #{dot_attention.1} parent=15 // pred_check
          %p151 = pneg %p84
        $region26: #{dot_attention.1} parent=15 // pred_check_branch
          %153 = sbr.rel (%p151) target = $region28
        $region27: #{dot_attention.1} parent=15 // pred_region
          %p154 = scmp.lt.s32.totalorder %s12, 1
          %s155 = scalar_select %p154, %s12, 1
          %s156 = smul.addr %s155, 2
          %s157 = smul.addr %s156, 8
          %s158 = scalar_lea.vmem %s2, %s157
        $region28: #{dot_attention.1} parent=15 // pred_fallthru
          _
      $region16: #{dot_attention.1} parent=5 // pred_fallthru
        _
      %p159 = scmp.le.s32.totalorder 1, %s12
      %p160 = scmp.lt.s32.totalorder %s12, 3
      %p161 = pnand %p159, %p160
      %p162 = pneg %p161
      // Predicated region
      $region29: #{dot_attention.1} parent=5 // pred_check
        _
      $region30: #{dot_attention.1} parent=5 // pred_check_branch
        %164 = sbr.rel (%p161) target = $region32
      $region31: #{dot_attention.1} parent=5 // pred_region
        %s165 = ssub.s32 %s12, 1
        %p166 = scmp.lt.s32.totalorder %s17, 1
        %s167 = scalar_select %p166, %s17, 1
        %s168 = smul.addr %s167, 2
        %s169 = smul.addr %s168, 8
        %s170 = scalar_lea.vmem %s0, %s169
        %p171 = pneg %p38
        %p172 = pneg %p35
        %p173 = scmp.lt.s32.totalorder %s17, 1
        %s174 = scalar_select %p173, %s17, 1
        %s175 = smul.addr %s174, 2
        %s176 = smul.addr %s175, 8
        %s177 = scalar_lea.vmem %s1, %s176
        %p178 = pneg %p64
        %p179 = pneg %p61
        %p180 = scmp.lt.s32.totalorder %s17, 1
        %s181 = scalar_select %p180, %s17, 1
        %s182 = smul.addr %s181, 2
        %s183 = smul.addr %s182, 8
        %s184 = scalar_lea.vmem %s2, %s183
        %p185 = pneg %p90
        %p186 = pneg %p87
        %p187 = pneg %p116
        %p188 = pneg %p113
        %s189 = sand.u32 %s103, 1
        %s190 = scalar_lea.sflag [#allocation3], %s189
        %s191 = sand.u32 %s103, 1
        %s192 = smul.addr %s191, 16
        %s193 = scalar_lea.vmem [#allocation2], %s192
        %p194 = scmp.lt.s32.totalorder %s17, 1
        %s195 = scalar_select %p194, %s17, 1
        %s196 = smul.addr %s195, 2
        %s197 = smul.addr %s196, 8
        %s198 = scalar_lea.vmem %s0, %s197
        %p199 = scmp.lt.s32.totalorder %s17, 1
        %s200 = scalar_select %p199, %s17, 1
        %s201 = smul.addr %s200, 2
        %s202 = smul.addr %s201, 8
        %s203 = scalar_lea.vmem %s1, %s202
        %p204 = scmp.lt.s32.totalorder %s17, 1
        %s205 = scalar_select %p204, %s17, 1
        %s206 = smul.addr %s205, 2
        %s207 = smul.addr %s206, 8
        %s208 = scalar_lea.vmem %s2, %s207
        %v209 = vld [vmem:[%s198] sm:$0xff]
        %v210 = vld [vmem:[%s198 + $0x8] sm:$0xff]
        %v211 = vld [vmem:[%s203] sm:$0xff]
        %v212 = vld [vmem:[%s203 + $0x8] sm:$0xff]
        %v213 = vld [vmem:[%s208] sm:$0xff]
        %v214 = vld [vmem:[%s208 + $0x8] sm:$0xff]
        %v215 = vmax.f32 %v209, %v210
        %v216 = vrot.slane %v215, 4
        %v217 = vmax.f32 %v215, %v216
        %v218 = vrot.slane %v217, 2
        %v219 = vmax.f32 %v217, %v218
        %v220 = vrot.slane %v219, 1
        %v221 = vmax.f32 %v219, %v220
        %v222 = vsub.f32 %v209, %v221
        %v223 = vsub.f32 %v210, %v221
        %v224 = vmul.f32 %v222, 1.442695
        %v225 = vpow.pop %v224
        %v226 = vmul.f32 %v223, 1.442695
        %v227 = vpow.pop %v226
        %v228 = vadd.f32 %v225, %v227
        %v229 = vrot.slane %v228, 4
        %v230 = vadd.f32 %v228, %v229
        %v231 = vrot.slane %v230, 2
        %v232 = vadd.f32 %v230, %v231
        %v233 = vrot.slane %v232, 1
        %v234 = vadd.f32 %v232, %v233
        %v235 = vrcp.pop %v234
        %v236 = vmul.f32 %v225, %v235
        %v237 = vmul.f32 %v227, %v235
        %v238 = vmul.f32 %v236, %v211
        %v239 = vmul.f32 %v237, %v212
        %v240 = vmul.f32 %v238, 0.5
        %v241 = vmul.f32 %v239, 0.5
        %v242 = vmul.f32 %v238, 0.70710677
        %v243 = vmul.f32 %v239, 0.70710677
        %v244 = verf.f32.pop %v242
        %v245 = verf.f32.pop %v243
        %v246 = vadd.f32 %v244, 1.0
        %v247 = vadd.f32 %v245, 1.0
        %v248 = vmul.f32 %v240, %v246
        %v249 = vmul.f32 %v241, %v247
        %v250 = vadd.f32 %v248, %v249
        %v251 = vrot.slane %v250, 4
        %v252 = vadd.f32 %v250, %v251
        %v253 = vrot.slane %v252, 2
        %v254 = vadd.f32 %v252, %v253
        %v255 = vrot.slane %v254, 1
        %v256 = vadd.f32 %v254, %v255
        %v257 = vmul.f32 %v213, %v256
        %v258 = vmul.f32 %v214, %v256
        %259 = vst [vmem:[%s193] sm:$0xff] %v257
        %260 = vst [vmem:[%s193 + $0x8] sm:$0xff] %v258
        %s261 = sand.u32 %s103, 1
        %s262 = scalar_lea.sflag [#allocation3], %s261
        %s263 = sand.u32 %s103, 1
        %s264 = smul.addr %s263, 16
        %s265 = scalar_lea.vmem [#allocation2], %s264
        // Predicated region
        $region33: #{dot_attention.1} parent=31 // pred_check
          %p266 = pneg %p113
        $region34: #{dot_attention.1} parent=31 // pred_check_branch
          %268 = sbr.rel (%p266) target = $region36
        $region35: #{dot_attention.1} parent=31 // pred_region
          %s270 = ssub.s32 256, 256
          %271 = vsyncadd %s262, %s270
          %s272 = smul.addr %s17, 2
          %s273 = smul.addr %s272, 128
          %s274 = scalar_lea.hbm %s3, %s273
          %s275 = sshll.u32 %s265, 4
          %s276 = int_to_ptr.vmem [resolvable:$true] %s275
          %281 = dma.vmem_to_hbm [thread:$0]  %s276, 256, %s274, %s262, 128, 128, 8
        $region36: #{dot_attention.1} parent=31 // pred_fallthru
          _
      $region32: #{dot_attention.1} parent=5 // pred_fallthru
        _
      %p282 = scmp.le.s32.totalorder 2, %s12
      // Predicated region
      $region37: #{dot_attention.1} parent=5 // pred_check
        %p283 = pneg %p282
      $region38: #{dot_attention.1} parent=5 // pred_check_branch
        %285 = sbr.rel (%p283) target = $region40
      $region39: #{dot_attention.1} parent=5 // pred_region
        %s286 = ssub.s32 %s12, 2
        // Predicated region
        $region41: #{dot_attention.1} parent=39 // pred_check
          %p287 = pneg %p119
        $region42: #{dot_attention.1} parent=39 // pred_check_branch
          %289 = sbr.rel (%p287) target = $region44
        $region43: #{dot_attention.1} parent=39 // pred_region
          %s290 = sand.u32 %s104, 1
          %s291 = scalar_lea.sflag [#allocation3], %s290
          %s292 = sand.u32 %s104, 1
          %s293 = smul.addr %s292, 16
          %s294 = scalar_lea.vmem [#allocation2], %s293
          %295 = dma.done %s291, 256
        $region44: #{dot_attention.1} parent=39 // pred_fallthru
          _
      $region40: #{dot_attention.1} parent=5 // pred_fallthru
        _
    $region6: #{dot_attention.1} parent=1 // loop_footer
      %s16 = sadd.s32 1, %s12
    $region7: #{dot_attention.1} parent=1 // loop_footer_branch
      %11 = sbr.rel target = $region3
    $region8: #{dot_attention.1} parent=1 // loop_exit
      _
    %296 = vsyncpa [#allocation3], 1
    %s297 = scalar_lea.sflag [#allocation3], 1
    %298 = vsyncpa %s297, 1

</llo_original>
